<compile_context>
chip_gen: v7x
topology: tpu7x:2x2x1
jax: 0.10.0
libtpu: 0.0.40
codegen_flags: <defaults>
</compile_context>

<pallas_src>
import jax
import jax.numpy as jnp
from jax.experimental import pallas as pl
from jax.experimental.pallas import tpu as pltpu

EPS = 1e-5
KH, KW = 3, 3
LANES = 128  # padded length of the flattened spatial (H*W) axis


def _make_kernel(H, W, HW, Cout):
    inv_n = 1.0 / float(HW)
    inv_w = 1.0 / float(W)

    def kernel(x_ref, gb_ref, w_ref, o_ref, p_ref):
        # x_ref:  (Cin, LANES)          f32, flattened H*W in lanes [0, HW), zeros elsewhere
        # gb_ref: (Cin, 2)              f32, column 0 = gamma, column 1 = beta
        # w_ref:  (KH*KW*Cout, Cin)     f32, tap-major packed conv weights (t = kh*KW + kw)
        # o_ref:  (Cout, LANES)         f32, output pixels in lanes [0, HW)
        # p_ref:  (KH*KW*Cout, LANES)   f32 VMEM scratch for the fused matmul result
        x = x_ref[...]

        # ---- in-kernel column masks (no DMA'd mask array) --------------------
        pos = jax.lax.broadcasted_iota(jnp.int32, (1, LANES), 1).astype(jnp.float32)
        row = jnp.floor((pos + 0.5) * inv_w)          # exact for these small ints
        col = pos - row * W                           # p mod W, exact in f32
        m_valid = (pos < HW).astype(jnp.float32)      # lane holds a real pixel
        m_left = (col > 0.5).astype(jnp.float32)      # output col != 0     (dw = -1 taps)
        m_right = (col < W - 1.5).astype(jnp.float32) # output col != W-1   (dw = +1 taps)

        # ---- BatchNorm (batch stats, biased var, two-pass) + ReLU -------------
        mean = jnp.sum(x, axis=1, keepdims=True) * inv_n      # pad lanes are zero
        xc = (x - mean) * m_valid                             # centered, pad lanes zeroed
        var = jnp.sum(xc * xc, axis=1, keepdims=True) * inv_n
        inv_std = jax.lax.rsqrt(var + EPS)

        gb = gb_ref[...]
        scale = gb[:, 0:1] * inv_std                          # gamma / std, (Cin, 1)
        beta = gb[:, 1:2]                                     # (Cin, 1)
        y = jnp.maximum(xc * scale + beta, 0.0) * m_valid     # (Cin, LANES), pad lanes zero

        # ---- 3x3 conv: ONE fused (9*Cout, Cin) @ (Cin, LANES) MXU matmul ------
        p_ref[...] = jnp.dot(w_ref[...], y, preferred_element_type=jnp.float32)

        # Per tap: take the 32-row slice, roll the (Cout, LANES) PRODUCT (not the
        # activations), mask the horizontally-wrapping columns, accumulate.
        acc = None
        t = 0
        for dh in (-1, 0, 1):
            for dw in (-1, 0, 1):
                s = dh * W + dw                               # flattened shift
                pt = p_ref[pl.ds(t * Cout, Cout), :]          # (Cout, LANES), 8-sublane aligned
                if s != 0:
                    pt = pltpu.roll(pt, shift=(-s) % LANES, axis=1)
                if dw == -1:
                    pt = pt * m_left
                elif dw == 1:
                    pt = pt * m_right
                acc = pt if acc is None else acc + pt
                t += 1

        o_ref[...] = acc                                      # one dense (32,128) store

    return kernel


def pack_weights(w_oihw):
    """(Cout, Cin, 3, 3) -> (9*Cout, Cin), tap-major (t = kh*KW + kw).

    Call ONCE at parameter-load time (outside the per-call jitted path)."""
    Cout, Cin = w_oihw.shape[0], w_oihw.shape[1]
    return (jnp.transpose(w_oihw, (2, 3, 0, 1))
            .reshape(KH * KW * Cout, Cin)
            .astype(jnp.float32))


@jax.jit
def bn_relu_conv(x_nchw, gamma, beta, w_packed):
    """x_nchw: (1, Cin, H, W); gamma/beta: (Cin,); w_packed: (9*Cout, Cin) -> (1, Cout, H, W)."""
    N, Cin, H, W = x_nchw.shape
    assert N == 1, "kernel assumes batch size 1 (as in the reference module)"
    Cout = w_packed.shape[0] // (KH * KW)
    HW = H * W
    assert HW + W + 1 <= LANES, "rolled reads must land in the zero-padded lanes"

    # Channel-major flattened activations, zero padded to 128 lanes (no transposes).
    x2d = x_nchw.reshape(Cin, HW).astype(jnp.float32)
    xp = jnp.pad(x2d, ((0, 0), (0, LANES - HW)))

    # gamma/beta packed into a single (Cin, 2) buffer -> one DMA.
    gb = jnp.stack([gamma.astype(jnp.float32), beta.astype(jnp.float32)], axis=1)

    out2d = pl.pallas_call(
        _make_kernel(H, W, HW, Cout),
        out_shape=jax.ShapeDtypeStruct((Cout, LANES), jnp.float32),
        in_specs=[pl.BlockSpec(memory_space=pltpu.MemorySpace.VMEM)] * 3,
        out_specs=pl.BlockSpec(memory_space=pltpu.MemorySpace.VMEM),
        scratch_shapes=[pltpu.VMEM((KH * KW * Cout, LANES), jnp.float32)],
    )(xp, gb, w_packed)

    # Output is already channel-major: slice off the pad lanes and reshape (no transpose).
    return out2d[:, :HW].reshape(Cout, H, W)[None]


def reference_forward(x_nchw, gamma, beta, w_oihw):
    mean = x_nchw.mean(axis=(0, 2, 3), keepdims=True)
    var = ((x_nchw - mean) ** 2).mean(axis=(0, 2, 3), keepdims=True)
    y = (x_nchw - mean) * jax.lax.rsqrt(var + EPS)
    y = y * gamma.reshape(1, -1, 1, 1) + beta.reshape(1, -1, 1, 1)
    y = jnp.maximum(y, 0.0)
    return jax.lax.conv_general_dilated(
        y, w_oihw, window_strides=(1, 1), padding=((1, 1), (1, 1)),
        dimension_numbers=("NCHW", "OIHW", "NCHW"))


if __name__ == "__main__":
    key = jax.random.PRNGKey(0)
    k_x, k_g, k_b, k_w = jax.random.split(key, 4)

    # Shapes implied by the module: x625 = [1, 128, 7, 7], Conv2d(128 -> 32, 3x3)
    Cin, Cout, H, W = 128, 32, 7, 7
    x = jax.random.normal(k_x, (1, Cin, H, W), dtype=jnp.float32)
    gamma = 1.0 + 0.1 * jax.random.normal(k_g, (Cin,), dtype=jnp.float32)
    beta = 0.1 * jax.random.normal(k_b, (Cin,), dtype=jnp.float32)
    w = jax.random.normal(k_w, (Cout, Cin, KH, KW), dtype=jnp.float32) * (1.0 / (Cin * KH * KW) ** 0.5)

    # Weight packing happens once, outside the per-call path.
    w_packed = jax.block_until_ready(pack_weights(w))

    out = jax.block_until_ready(bn_relu_conv(x, gamma, beta, w_packed))
    ref = jax.block_until_ready(reference_forward(x, gamma, beta, w))

    assert out.shape == (1, Cout, H, W), out.shape
    assert jnp.allclose(out, ref, rtol=1e-4, atol=1e-4), float(jnp.max(jnp.abs(out - ref)))
    print("KERNEL_OK")
</pallas_src>

<mosaic_0001>
module attributes {stable_mosaic.version = 11 : i64} {
  func.func @kernel(%arg0: memref<128x128xf32, #tpu.memory_space<vmem>>, %arg1: memref<128x2xf32, #tpu.memory_space<vmem>>, %arg2: memref<288x128xf32, #tpu.memory_space<vmem>>, %arg3: memref<32x128xf32, #tpu.memory_space<vmem>>, %arg4: memref<288x128xf32, #tpu.memory_space<vmem>>) attributes {dimension_semantics = [], scalar_prefetch = 0 : i64, scratch_operands = 1 : i64, tpu.core_type = #tpu.core_type<tc>} {
    %c0 = arith.constant 0 : index
    %c0_0 = arith.constant 0 : index
    %0 = vector.load %arg0[%c0, %c0_0] : memref<128x128xf32, #tpu.memory_space<vmem>>, vector<128x128xf32>
    %1 = tpu.iota {dimensions = array<i32: 1>} : vector<1x128xi32>
    %2 = arith.sitofp %1 : vector<1x128xi32> to vector<1x128xf32>
    %cst = arith.constant 5.000000e-01 : f32
    %3 = vector.broadcast %cst : f32 to vector<1x128xf32>
    %4 = arith.addf %2, %3 : vector<1x128xf32>
    %cst_1 = arith.constant 0.142857149 : f32
    %5 = vector.broadcast %cst_1 : f32 to vector<1x128xf32>
    %6 = arith.mulf %4, %5 : vector<1x128xf32>
    %7 = math.floor %6 : vector<1x128xf32>
    %cst_2 = arith.constant 7.000000e+00 : f32
    %8 = vector.broadcast %cst_2 : f32 to vector<1x128xf32>
    %9 = arith.mulf %7, %8 : vector<1x128xf32>
    %10 = arith.subf %2, %9 : vector<1x128xf32>
    %cst_3 = arith.constant 4.900000e+01 : f32
    %11 = vector.broadcast %cst_3 : f32 to vector<1x128xf32>
    %12 = arith.cmpf olt, %2, %11 : vector<1x128xf32>
    %13 = arith.extui %12 : vector<1x128xi1> to vector<1x128xi32>
    %14 = arith.sitofp %13 : vector<1x128xi32> to vector<1x128xf32>
    %cst_4 = arith.constant 5.000000e-01 : f32
    %15 = vector.broadcast %cst_4 : f32 to vector<1x128xf32>
    %16 = arith.cmpf ogt, %10, %15 : vector<1x128xf32>
    %17 = arith.extui %16 : vector<1x128xi1> to vector<1x128xi32>
    %18 = arith.sitofp %17 : vector<1x128xi32> to vector<1x128xf32>
    %cst_5 = arith.constant 5.500000e+00 : f32
    %19 = vector.broadcast %cst_5 : f32 to vector<1x128xf32>
    %20 = arith.cmpf olt, %10, %19 : vector<1x128xf32>
    %21 = arith.extui %20 : vector<1x128xi1> to vector<1x128xi32>
    %22 = arith.sitofp %21 : vector<1x128xi32> to vector<1x128xf32>
    %cst_6 = arith.constant dense<0.000000e+00> : vector<128xf32>
    %23 = vector.multi_reduction <add>, %0, %cst_6 [1] : vector<128x128xf32> to vector<128xf32>
    %24 = vector.shape_cast %23 : vector<128xf32> to vector<128x1xf32>
    %cst_7 = arith.constant 0.0204081628 : f32
    %25 = vector.broadcast %cst_7 : f32 to vector<128x1xf32>
    %26 = arith.mulf %24, %25 : vector<128x1xf32>
    %27 = vector.broadcast %26 : vector<128x1xf32> to vector<128x128xf32>
    %28 = arith.subf %0, %27 : vector<128x128xf32>
    %29 = vector.broadcast %14 : vector<1x128xf32> to vector<128x128xf32>
    %30 = arith.mulf %28, %29 : vector<128x128xf32>
    %31 = arith.mulf %30, %30 : vector<128x128xf32>
    %cst_8 = arith.constant dense<0.000000e+00> : vector<128xf32>
    %32 = vector.multi_reduction <add>, %31, %cst_8 [1] : vector<128x128xf32> to vector<128xf32>
    %33 = vector.shape_cast %32 : vector<128xf32> to vector<128x1xf32>
    %cst_9 = arith.constant 0.0204081628 : f32
    %34 = vector.broadcast %cst_9 : f32 to vector<128x1xf32>
    %35 = arith.mulf %33, %34 : vector<128x1xf32>
    %cst_10 = arith.constant 9.99999974E-6 : f32
    %36 = vector.broadcast %cst_10 : f32 to vector<128x1xf32>
    %37 = arith.addf %35, %36 : vector<128x1xf32>
    %38 = math.rsqrt %37 : vector<128x1xf32>
    %c0_11 = arith.constant 0 : index
    %c0_12 = arith.constant 0 : index
    %39 = vector.load %arg1[%c0_11, %c0_12] : memref<128x2xf32, #tpu.memory_space<vmem>>, vector<128x2xf32>
    %40 = vector.extract_strided_slice %39 {offsets = [0, 0], sizes = [128, 1], strides = [1, 1]} : vector<128x2xf32> to vector<128x1xf32>
    %41 = arith.mulf %40, %38 : vector<128x1xf32>
    %42 = vector.extract_strided_slice %39 {offsets = [0, 1], sizes = [128, 1], strides = [1, 1]} : vector<128x2xf32> to vector<128x1xf32>
    %43 = vector.broadcast %41 : vector<128x1xf32> to vector<128x128xf32>
    %44 = arith.mulf %30, %43 : vector<128x128xf32>
    %45 = vector.broadcast %42 : vector<128x1xf32> to vector<128x128xf32>
    %46 = arith.addf %44, %45 : vector<128x128xf32>
    %cst_13 = arith.constant 0.000000e+00 : f32
    %47 = vector.broadcast %cst_13 : f32 to vector<128x128xf32>
    %48 = arith.maximumf %46, %47 : vector<128x128xf32>
    %49 = vector.broadcast %14 : vector<1x128xf32> to vector<128x128xf32>
    %50 = arith.mulf %48, %49 : vector<128x128xf32>
    %c0_14 = arith.constant 0 : index
    %c0_15 = arith.constant 0 : index
    %51 = vector.load %arg2[%c0_14, %c0_15] : memref<288x128xf32, #tpu.memory_space<vmem>>, vector<288x128xf32>
    %cst_16 = arith.constant dense<0.000000e+00> : vector<288x128xf32>
    %52 = tpu.matmul %51, %50, %cst_16 {dimension_numbers = #tpu.dot_dimension_numbers<[1], [0], [0], [1], [0, 0, 1, 1], [], []>} : vector<288x128xf32>, vector<128x128xf32>, vector<288x128xf32> -> vector<288x128xf32>
    %c0_17 = arith.constant 0 : index
    %c0_18 = arith.constant 0 : index
    %53 = vector.load %arg4[%c0_17, %c0_18] : memref<288x128xf32, #tpu.memory_space<vmem>>, vector<288x128xf32>
    tpu.vector_store %arg4[%c0_17, %c0_18], %52 {strides = array<i32>} : memref<288x128xf32, #tpu.memory_space<vmem>>, vector<288x128xf32>,
    %c0_19 = arith.constant 0 : index
    %c0_20 = arith.constant 0 : index
    %54 = vector.load %arg4[%c0_19, %c0_20] : memref<288x128xf32, #tpu.memory_space<vmem>>, vector<32x128xf32>
    %c8_i32 = arith.constant 8 : i32
    %55 = tpu.dynamic_rotate %54 by %c8_i32 dim 1 : vector<32x128xf32>, i32 -> vector<32x128xf32>
    %56 = vector.broadcast %18 : vector<1x128xf32> to vector<32x128xf32>
    %57 = arith.mulf %55, %56 : vector<32x128xf32>
    %c32 = arith.constant 32 : index
    %c0_21 = arith.constant 0 : index
    %58 = vector.load %arg4[%c32, %c0_21] : memref<288x128xf32, #tpu.memory_space<vmem>>, vector<32x128xf32>
    %c7_i32 = arith.constant 7 : i32
    %59 = tpu.dynamic_rotate %58 by %c7_i32 dim 1 : vector<32x128xf32>, i32 -> vector<32x128xf32>
    %60 = arith.addf %57, %59 : vector<32x128xf32>
    %c64 = arith.constant 64 : index
    %c0_22 = arith.constant 0 : index
    %61 = vector.load %arg4[%c64, %c0_22] : memref<288x128xf32, #tpu.memory_space<vmem>>, vector<32x128xf32>
    %c6_i32 = arith.constant 6 : i32
    %62 = tpu.dynamic_rotate %61 by %c6_i32 dim 1 : vector<32x128xf32>, i32 -> vector<32x128xf32>
    %63 = vector.broadcast %22 : vector<1x128xf32> to vector<32x128xf32>
    %64 = arith.mulf %62, %63 : vector<32x128xf32>
    %65 = arith.addf %60, %64 : vector<32x128xf32>
    %c96 = arith.constant 96 : index
    %c0_23 = arith.constant 0 : index
    %66 = vector.load %arg4[%c96, %c0_23] : memref<288x128xf32, #tpu.memory_space<vmem>>, vector<32x128xf32>
    %c1_i32 = arith.constant 1 : i32
    %67 = tpu.dynamic_rotate %66 by %c1_i32 dim 1 : vector<32x128xf32>, i32 -> vector<32x128xf32>
    %68 = vector.broadcast %18 : vector<1x128xf32> to vector<32x128xf32>
    %69 = arith.mulf %67, %68 : vector<32x128xf32>
    %70 = arith.addf %65, %69 : vector<32x128xf32>
    %c128 = arith.constant 128 : index
    %c0_24 = arith.constant 0 : index
    %71 = vector.load %arg4[%c128, %c0_24] : memref<288x128xf32, #tpu.memory_space<vmem>>, vector<32x128xf32>
    %72 = arith.addf %70, %71 : vector<32x128xf32>
    %c160 = arith.constant 160 : index
    %c0_25 = arith.constant 0 : index
    %73 = vector.load %arg4[%c160, %c0_25] : memref<288x128xf32, #tpu.memory_space<vmem>>, vector<32x128xf32>
    %c127_i32 = arith.constant 127 : i32
    %74 = tpu.dynamic_rotate %73 by %c127_i32 dim 1 : vector<32x128xf32>, i32 -> vector<32x128xf32>
    %75 = vector.broadcast %22 : vector<1x128xf32> to vector<32x128xf32>
    %76 = arith.mulf %74, %75 : vector<32x128xf32>
    %77 = arith.addf %72, %76 : vector<32x128xf32>
    %c192 = arith.constant 192 : index
    %c0_26 = arith.constant 0 : index
    %78 = vector.load %arg4[%c192, %c0_26] : memref<288x128xf32, #tpu.memory_space<vmem>>, vector<32x128xf32>
    %c122_i32 = arith.constant 122 : i32
    %79 = tpu.dynamic_rotate %78 by %c122_i32 dim 1 : vector<32x128xf32>, i32 -> vector<32x128xf32>
    %80 = vector.broadcast %18 : vector<1x128xf32> to vector<32x128xf32>
    %81 = arith.mulf %79, %80 : vector<32x128xf32>
    %82 = arith.addf %77, %81 : vector<32x128xf32>
    %c224 = arith.constant 224 : index
    %c0_27 = arith.constant 0 : index
    %83 = vector.load %arg4[%c224, %c0_27] : memref<288x128xf32, #tpu.memory_space<vmem>>, vector<32x128xf32>
    %c121_i32 = arith.constant 121 : i32
    %84 = tpu.dynamic_rotate %83 by %c121_i32 dim 1 : vector<32x128xf32>, i32 -> vector<32x128xf32>
    %85 = arith.addf %82, %84 : vector<32x128xf32>
    %c256 = arith.constant 256 : index
    %c0_28 = arith.constant 0 : index
    %86 = vector.load %arg4[%c256, %c0_28] : memref<288x128xf32, #tpu.memory_space<vmem>>, vector<32x128xf32>
    %c120_i32 = arith.constant 120 : i32
    %87 = tpu.dynamic_rotate %86 by %c120_i32 dim 1 : vector<32x128xf32>, i32 -> vector<32x128xf32>
    %88 = vector.broadcast %22 : vector<1x128xf32> to vector<32x128xf32>
    %89 = arith.mulf %87, %88 : vector<32x128xf32>
    %90 = arith.addf %85, %89 : vector<32x128xf32>
    %c0_29 = arith.constant 0 : index
    %c0_30 = arith.constant 0 : index
    %91 = vector.load %arg3[%c0_29, %c0_30] : memref<32x128xf32, #tpu.memory_space<vmem>>, vector<32x128xf32>
    tpu.vector_store %arg3[%c0_29, %c0_30], %90 {strides = array<i32>} : memref<32x128xf32, #tpu.memory_space<vmem>>, vector<32x128xf32>,
    return
  }
}

</mosaic_0001>

<llo_original>
// kernel: bn_relu_conv.1
$region0: #{bn_relu_conv.1}
  #allocation0 [shape = 'u32[]', space=smem, size = 0x4, offset = 0x4, fixed_abs, tag = 'smem constant byte address 0x4 - core index']
  #allocation1 [shape = 'u32[144,128]{1,0:T(1,128)}', space=vmem, size = 0x12000, scoped, tag = 'internal scratch']
  #allocation2 [shape = 'f32[288,128]{1,0:T(8,128)}', space=vmem, size = 0x24000, scoped, tag = 'scratch operand']
  %s0 = inlined_call_operand.vmem [shape: f32[128,128], index: 0, kind: input, shape index: {}]
  %s1 = inlined_call_operand.vmem [shape: f32[128,2], index: 1, kind: input, shape index: {}]
  %s2 = inlined_call_operand.vmem [shape: f32[288,128], index: 2, kind: input, shape index: {}]
  %s3 = inlined_call_operand.vmem [shape: f32[32,128], index: 3, kind: output, shape index: {}]
  %s4 = sld [smem:[#allocation0]]
  $region22: #{bn_relu_conv.1} parent=0
    _
  %s6 = ssub.s32 1, %s4
  %s7 = scalar_select 0, %s6, %s4
  // Predicated region
  $region2: #{bn_relu_conv.1} parent=0 // pred_check
    _
  $region3: #{bn_relu_conv.1} parent=0 // pred_check_branch
    %9 = sbr.rel (0) target = $region5
  $region4: #{bn_relu_conv.1} parent=0 // pred_region
    _
  $region5: #{bn_relu_conv.1} parent=0 // pred_fallthru
    _
  // Predicated region
  $region6: #{bn_relu_conv.1} parent=0 // pred_check
    _
  $region7: #{bn_relu_conv.1} parent=0 // pred_check_branch
    %11 = sbr.rel (0) target = $region9
  $region8: #{bn_relu_conv.1} parent=0 // pred_region
    _
  $region9: #{bn_relu_conv.1} parent=0 // pred_fallthru
    _
  // Predicated region
  $region10: #{bn_relu_conv.1} parent=0 // pred_check
    _
  $region11: #{bn_relu_conv.1} parent=0 // pred_check_branch
    %13 = sbr.rel (0) target = $region13
  $region12: #{bn_relu_conv.1} parent=0 // pred_region
    _
  $region13: #{bn_relu_conv.1} parent=0 // pred_fallthru
    _
  %v14 = vld [vmem:[%s0] sm:$0xff]
  %v15 = vld [vmem:[%s0 + $0x8] sm:$0xff]
  %v16 = vld [vmem:[%s0 + $0x10] sm:$0xff]
  %v17 = vld [vmem:[%s0 + $0x18] sm:$0xff]
  %v18 = vld [vmem:[%s0 + $0x20] sm:$0xff]
  %v19 = vld [vmem:[%s0 + $0x28] sm:$0xff]
  %v20 = vld [vmem:[%s0 + $0x30] sm:$0xff]
  %v21 = vld [vmem:[%s0 + $0x38] sm:$0xff]
  %v22 = vld [vmem:[%s0 + $0x40] sm:$0xff]
  %v23 = vld [vmem:[%s0 + $0x48] sm:$0xff]
  %v24 = vld [vmem:[%s0 + $0x50] sm:$0xff]
  %v25 = vld [vmem:[%s0 + $0x58] sm:$0xff]
  %v26 = vld [vmem:[%s0 + $0x60] sm:$0xff]
  %v27 = vld [vmem:[%s0 + $0x68] sm:$0xff]
  %v28 = vld [vmem:[%s0 + $0x70] sm:$0xff]
  %v29 = vld [vmem:[%s0 + $0x78] sm:$0xff]
  %v30 = vlaneseq
  %v31 = vand.u32 %v30, 127
  %v32 = vcvt.s32.f32 %v31
  %v33 = vadd.f32 %v32, 0.5
  %v34 = vmul.f32 %v33, 0.14285715
  %v35 = vfloor.f32 %v34
  %v36 = vmul.f32 %v35, 7.0
  %v37 = vsub.f32 %v32, %v36
  %vm38 = vcmp.lt.f32.partialorder %v32, 49.0
  %v39 = vsel %vm38, 1, 0
  %v40 = vcvt.s32.f32 %v39
  %vm41 = vcmp.gt.f32.partialorder %v37, 0.5
  %v42 = vsel %vm41, 1, 0
  %v43 = vcvt.s32.f32 %v42
  %vm44 = vcmp.lt.f32.partialorder %v37, 5.5
  %v45 = vsel %vm44, 1, 0
  %v46 = vcvt.s32.f32 %v45
  %47 = vadd.xlane.f32.xlu0 %v14
  %v48 = vpop.xlane.xlu0 %47
  %49 = vadd.xlane.f32.xlu0 %v15
  %v50 = vpop.xlane.xlu0 %49
  %51 = vadd.xlane.f32.xlu0 %v16
  %v52 = vpop.xlane.xlu0 %51
  %53 = vadd.xlane.f32.xlu0 %v17
  %v54 = vpop.xlane.xlu0 %53
  %55 = vadd.xlane.f32.xlu0 %v18
  %v56 = vpop.xlane.xlu0 %55
  %57 = vadd.xlane.f32.xlu0 %v19
  %v58 = vpop.xlane.xlu0 %57
  %59 = vadd.xlane.f32.xlu0 %v20
  %v60 = vpop.xlane.xlu0 %59
  %61 = vadd.xlane.f32.xlu0 %v21
  %v62 = vpop.xlane.xlu0 %61
  %63 = vadd.xlane.f32.xlu0 %v22
  %v64 = vpop.xlane.xlu0 %63
  %65 = vadd.xlane.f32.xlu0 %v23
  %v66 = vpop.xlane.xlu0 %65
  %67 = vadd.xlane.f32.xlu0 %v24
  %v68 = vpop.xlane.xlu0 %67
  %69 = vadd.xlane.f32.xlu0 %v25
  %v70 = vpop.xlane.xlu0 %69
  %71 = vadd.xlane.f32.xlu0 %v26
  %v72 = vpop.xlane.xlu0 %71
  %73 = vadd.xlane.f32.xlu0 %v27
  %v74 = vpop.xlane.xlu0 %73
  %75 = vadd.xlane.f32.xlu0 %v28
  %v76 = vpop.xlane.xlu0 %75
  %77 = vadd.xlane.f32.xlu0 %v29
  %v78 = vpop.xlane.xlu0 %77
  %v79 = vmul.f32 %v48, 0.020408163
  %v80 = vmul.f32 %v50, 0.020408163
  %v81 = vmul.f32 %v52, 0.020408163
  %v82 = vmul.f32 %v54, 0.020408163
  %v83 = vmul.f32 %v56, 0.020408163
  %v84 = vmul.f32 %v58, 0.020408163
  %v85 = vmul.f32 %v60, 0.020408163
  %v86 = vmul.f32 %v62, 0.020408163
  %v87 = vmul.f32 %v64, 0.020408163
  %v88 = vmul.f32 %v66, 0.020408163
  %v89 = vmul.f32 %v68, 0.020408163
  %v90 = vmul.f32 %v70, 0.020408163
  %v91 = vmul.f32 %v72, 0.020408163
  %v92 = vmul.f32 %v74, 0.020408163
  %v93 = vmul.f32 %v76, 0.020408163
  %v94 = vmul.f32 %v78, 0.020408163
  %v95 = vsub.f32 %v14, %v79
  %v96 = vsub.f32 %v15, %v80
  %v97 = vsub.f32 %v16, %v81
  %v98 = vsub.f32 %v17, %v82
  %v99 = vsub.f32 %v18, %v83
  %v100 = vsub.f32 %v19, %v84
  %v101 = vsub.f32 %v20, %v85
  %v102 = vsub.f32 %v21, %v86
  %v103 = vsub.f32 %v22, %v87
  %v104 = vsub.f32 %v23, %v88
  %v105 = vsub.f32 %v24, %v89
  %v106 = vsub.f32 %v25, %v90
  %v107 = vsub.f32 %v26, %v91
  %v108 = vsub.f32 %v27, %v92
  %v109 = vsub.f32 %v28, %v93
  %v110 = vsub.f32 %v29, %v94
  %v111 = vmul.f32 %v95, %v40
  %v112 = vmul.f32 %v96, %v40
  %v113 = vmul.f32 %v97, %v40
  %v114 = vmul.f32 %v98, %v40
  %v115 = vmul.f32 %v99, %v40
  %v116 = vmul.f32 %v100, %v40
  %v117 = vmul.f32 %v101, %v40
  %v118 = vmul.f32 %v102, %v40
  %v119 = vmul.f32 %v103, %v40
  %v120 = vmul.f32 %v104, %v40
  %v121 = vmul.f32 %v105, %v40
  %v122 = vmul.f32 %v106, %v40
  %v123 = vmul.f32 %v107, %v40
  %v124 = vmul.f32 %v108, %v40
  %v125 = vmul.f32 %v109, %v40
  %v126 = vmul.f32 %v110, %v40
  %v127 = vmul.f32 %v111, %v111
  %v128 = vmul.f32 %v112, %v112
  %v129 = vmul.f32 %v113, %v113
  %v130 = vmul.f32 %v114, %v114
  %v131 = vmul.f32 %v115, %v115
  %v132 = vmul.f32 %v116, %v116
  %v133 = vmul.f32 %v117, %v117
  %v134 = vmul.f32 %v118, %v118
  %v135 = vmul.f32 %v119, %v119
  %v136 = vmul.f32 %v120, %v120
  %v137 = vmul.f32 %v121, %v121
  %v138 = vmul.f32 %v122, %v122
  %v139 = vmul.f32 %v123, %v123
  %v140 = vmul.f32 %v124, %v124
  %v141 = vmul.f32 %v125, %v125
  %v142 = vmul.f32 %v126, %v126
  %143 = vadd.xlane.f32.xlu0 %v127
  %v144 = vpop.xlane.xlu0 %143
  %145 = vadd.xlane.f32.xlu0 %v128
  %v146 = vpop.xlane.xlu0 %145
  %147 = vadd.xlane.f32.xlu0 %v129
  %v148 = vpop.xlane.xlu0 %147
  %149 = vadd.xlane.f32.xlu0 %v130
  %v150 = vpop.xlane.xlu0 %149
  %151 = vadd.xlane.f32.xlu0 %v131
  %v152 = vpop.xlane.xlu0 %151
  %153 = vadd.xlane.f32.xlu0 %v132
  %v154 = vpop.xlane.xlu0 %153
  %155 = vadd.xlane.f32.xlu0 %v133
  %v156 = vpop.xlane.xlu0 %155
  %157 = vadd.xlane.f32.xlu0 %v134
  %v158 = vpop.xlane.xlu0 %157
  %159 = vadd.xlane.f32.xlu0 %v135
  %v160 = vpop.xlane.xlu0 %159
  %161 = vadd.xlane.f32.xlu0 %v136
  %v162 = vpop.xlane.xlu0 %161
  %163 = vadd.xlane.f32.xlu0 %v137
  %v164 = vpop.xlane.xlu0 %163
  %165 = vadd.xlane.f32.xlu0 %v138
  %v166 = vpop.xlane.xlu0 %165
  %167 = vadd.xlane.f32.xlu0 %v139
  %v168 = vpop.xlane.xlu0 %167
  %169 = vadd.xlane.f32.xlu0 %v140
  %v170 = vpop.xlane.xlu0 %169
  %171 = vadd.xlane.f32.xlu0 %v141
  %v172 = vpop.xlane.xlu0 %171
  %173 = vadd.xlane.f32.xlu0 %v142
  %v174 = vpop.xlane.xlu0 %173
  %v175 = vmul.f32 %v144, 0.020408163
  %v176 = vmul.f32 %v146, 0.020408163
  %v177 = vmul.f32 %v148, 0.020408163
  %v178 = vmul.f32 %v150, 0.020408163
  %v179 = vmul.f32 %v152, 0.020408163
  %v180 = vmul.f32 %v154, 0.020408163
  %v181 = vmul.f32 %v156, 0.020408163
  %v182 = vmul.f32 %v158, 0.020408163
  %v183 = vmul.f32 %v160, 0.020408163
  %v184 = vmul.f32 %v162, 0.020408163
  %v185 = vmul.f32 %v164, 0.020408163
  %v186 = vmul.f32 %v166, 0.020408163
  %v187 = vmul.f32 %v168, 0.020408163
  %v188 = vmul.f32 %v170, 0.020408163
  %v189 = vmul.f32 %v172, 0.020408163
  %v190 = vmul.f32 %v174, 0.020408163
  %v191 = vadd.f32 %v175, 1e-05
  %v192 = vadd.f32 %v176, 1e-05
  %v193 = vadd.f32 %v177, 1e-05
  %v194 = vadd.f32 %v178, 1e-05
  %v195 = vadd.f32 %v179, 1e-05
  %v196 = vadd.f32 %v180, 1e-05
  %v197 = vadd.f32 %v181, 1e-05
  %v198 = vadd.f32 %v182, 1e-05
  %v199 = vadd.f32 %v183, 1e-05
  %v200 = vadd.f32 %v184, 1e-05
  %v201 = vadd.f32 %v185, 1e-05
  %v202 = vadd.f32 %v186, 1e-05
  %v203 = vadd.f32 %v187, 1e-05
  %v204 = vadd.f32 %v188, 1e-05
  %v205 = vadd.f32 %v189, 1e-05
  %v206 = vadd.f32 %v190, 1e-05
  %v207 = vrsqrt.pop %v191
  %v208 = vrsqrt.pop %v192
  %v209 = vrsqrt.pop %v193
  %v210 = vrsqrt.pop %v194
  %v211 = vrsqrt.pop %v195
  %v212 = vrsqrt.pop %v196
  %v213 = vrsqrt.pop %v197
  %v214 = vrsqrt.pop %v198
  %v215 = vrsqrt.pop %v199
  %v216 = vrsqrt.pop %v200
  %v217 = vrsqrt.pop %v201
  %v218 = vrsqrt.pop %v202
  %v219 = vrsqrt.pop %v203
  %v220 = vrsqrt.pop %v204
  %v221 = vrsqrt.pop %v205
  %v222 = vrsqrt.pop %v206
  %v223 = vld [vmem:[%s1] sm:$0xff]
  %v224 = vld [vmem:[%s1 + $0x8] sm:$0xff]
  %v225 = vld [vmem:[%s1 + $0x10] sm:$0xff]
  %v226 = vld [vmem:[%s1 + $0x18] sm:$0xff]
  %v227 = vld [vmem:[%s1 + $0x20] sm:$0xff]
  %v228 = vld [vmem:[%s1 + $0x28] sm:$0xff]
  %v229 = vld [vmem:[%s1 + $0x30] sm:$0xff]
  %v230 = vld [vmem:[%s1 + $0x38] sm:$0xff]
  %v231 = vld [vmem:[%s1 + $0x40] sm:$0xff]
  %v232 = vld [vmem:[%s1 + $0x48] sm:$0xff]
  %v233 = vld [vmem:[%s1 + $0x50] sm:$0xff]
  %v234 = vld [vmem:[%s1 + $0x58] sm:$0xff]
  %v235 = vld [vmem:[%s1 + $0x60] sm:$0xff]
  %v236 = vld [vmem:[%s1 + $0x68] sm:$0xff]
  %v237 = vld [vmem:[%s1 + $0x70] sm:$0xff]
  %v238 = vld [vmem:[%s1 + $0x78] sm:$0xff]
  %v239 = vmul.f32 %v223, %v207
  %v240 = vmul.f32 %v224, %v208
  %v241 = vmul.f32 %v225, %v209
  %v242 = vmul.f32 %v226, %v210
  %v243 = vmul.f32 %v227, %v211
  %v244 = vmul.f32 %v228, %v212
  %v245 = vmul.f32 %v229, %v213
  %v246 = vmul.f32 %v230, %v214
  %v247 = vmul.f32 %v231, %v215
  %v248 = vmul.f32 %v232, %v216
  %v249 = vmul.f32 %v233, %v217
  %v250 = vmul.f32 %v234, %v218
  %v251 = vmul.f32 %v235, %v219
  %v252 = vmul.f32 %v236, %v220
  %v253 = vmul.f32 %v237, %v221
  %v254 = vmul.f32 %v238, %v222
  %256 = vset.pattern.permute.xlu0 0
  %257 = vperm.xlu0 %256, %v239
  %v258 = vpop.permute.xlu0 %257
  %261 = vset.pattern.permute.xlu0 0
  %262 = vperm.xlu0 %261, %v240
  %v263 = vpop.permute.xlu0 %262
  %266 = vset.pattern.permute.xlu0 0
  %267 = vperm.xlu0 %266, %v241
  %v268 = vpop.permute.xlu0 %267
  %271 = vset.pattern.permute.xlu0 0
  %272 = vperm.xlu0 %271, %v242
  %v273 = vpop.permute.xlu0 %272
  %276 = vset.pattern.permute.xlu0 0
  %277 = vperm.xlu0 %276, %v243
  %v278 = vpop.permute.xlu0 %277
  %281 = vset.pattern.permute.xlu0 0
  %282 = vperm.xlu0 %281, %v244
  %v283 = vpop.permute.xlu0 %282
  %286 = vset.pattern.permute.xlu0 0
  %287 = vperm.xlu0 %286, %v245
  %v288 = vpop.permute.xlu0 %287
  %291 = vset.pattern.permute.xlu0 0
  %292 = vperm.xlu0 %291, %v246
  %v293 = vpop.permute.xlu0 %292
  %296 = vset.pattern.permute.xlu0 0
  %297 = vperm.xlu0 %296, %v247
  %v298 = vpop.permute.xlu0 %297
  %301 = vset.pattern.permute.xlu0 0
  %302 = vperm.xlu0 %301, %v248
  %v303 = vpop.permute.xlu0 %302
  %306 = vset.pattern.permute.xlu0 0
  %307 = vperm.xlu0 %306, %v249
  %v308 = vpop.permute.xlu0 %307
  %311 = vset.pattern.permute.xlu0 0
  %312 = vperm.xlu0 %311, %v250
  %v313 = vpop.permute.xlu0 %312
  %316 = vset.pattern.permute.xlu0 0
  %317 = vperm.xlu0 %316, %v251
  %v318 = vpop.permute.xlu0 %317
  %321 = vset.pattern.permute.xlu0 0
  %322 = vperm.xlu0 %321, %v252
  %v323 = vpop.permute.xlu0 %322
  %326 = vset.pattern.permute.xlu0 0
  %327 = vperm.xlu0 %326, %v253
  %v328 = vpop.permute.xlu0 %327
  %331 = vset.pattern.permute.xlu0 0
  %332 = vperm.xlu0 %331, %v254
  %v333 = vpop.permute.xlu0 %332
  %v335 = vmul.f32 %v111, %v258
  %v336 = vmul.f32 %v112, %v263
  %v337 = vmul.f32 %v113, %v268
  %v338 = vmul.f32 %v114, %v273
  %v339 = vmul.f32 %v115, %v278
  %v340 = vmul.f32 %v116, %v283
  %v341 = vmul.f32 %v117, %v288
  %v342 = vmul.f32 %v118, %v293
  %v343 = vmul.f32 %v119, %v298
  %v344 = vmul.f32 %v120, %v303
  %v345 = vmul.f32 %v121, %v308
  %v346 = vmul.f32 %v122, %v313
  %v347 = vmul.f32 %v123, %v318
  %v348 = vmul.f32 %v124, %v323
  %v349 = vmul.f32 %v125, %v328
  %v350 = vmul.f32 %v126, %v333
  %352 = vset.pattern.permute.xlu0 1
  %353 = vperm.xlu0 %352, %v223
  %v354 = vpop.permute.xlu0 %353
  %357 = vset.pattern.permute.xlu0 1
  %358 = vperm.xlu0 %357, %v224
  %v359 = vpop.permute.xlu0 %358
  %362 = vset.pattern.permute.xlu0 1
  %363 = vperm.xlu0 %362, %v225
  %v364 = vpop.permute.xlu0 %363
  %367 = vset.pattern.permute.xlu0 1
  %368 = vperm.xlu0 %367, %v226
  %v369 = vpop.permute.xlu0 %368
  %372 = vset.pattern.permute.xlu0 1
  %373 = vperm.xlu0 %372, %v227
  %v374 = vpop.permute.xlu0 %373
  %377 = vset.pattern.permute.xlu0 1
  %378 = vperm.xlu0 %377, %v228
  %v379 = vpop.permute.xlu0 %378
  %382 = vset.pattern.permute.xlu0 1
  %383 = vperm.xlu0 %382, %v229
  %v384 = vpop.permute.xlu0 %383
  %387 = vset.pattern.permute.xlu0 1
  %388 = vperm.xlu0 %387, %v230
  %v389 = vpop.permute.xlu0 %388
  %392 = vset.pattern.permute.xlu0 1
  %393 = vperm.xlu0 %392, %v231
  %v394 = vpop.permute.xlu0 %393
  %397 = vset.pattern.permute.xlu0 1
  %398 = vperm.xlu0 %397, %v232
  %v399 = vpop.permute.xlu0 %398
  %402 = vset.pattern.permute.xlu0 1
  %403 = vperm.xlu0 %402, %v233
  %v404 = vpop.permute.xlu0 %403
  %407 = vset.pattern.permute.xlu0 1
  %408 = vperm.xlu0 %407, %v234
  %v409 = vpop.permute.xlu0 %408
  %412 = vset.pattern.permute.xlu0 1
  %413 = vperm.xlu0 %412, %v235
  %v414 = vpop.permute.xlu0 %413
  %417 = vset.pattern.permute.xlu0 1
  %418 = vperm.xlu0 %417, %v236
  %v419 = vpop.permute.xlu0 %418
  %422 = vset.pattern.permute.xlu0 1
  %423 = vperm.xlu0 %422, %v237
  %v424 = vpop.permute.xlu0 %423
  %427 = vset.pattern.permute.xlu0 1
  %428 = vperm.xlu0 %427, %v238
  %v429 = vpop.permute.xlu0 %428
  %v431 = vadd.f32 %v335, %v354
  %v432 = vadd.f32 %v336, %v359
  %v433 = vadd.f32 %v337, %v364
  %v434 = vadd.f32 %v338, %v369
  %v435 = vadd.f32 %v339, %v374
  %v436 = vadd.f32 %v340, %v379
  %v437 = vadd.f32 %v341, %v384
  %v438 = vadd.f32 %v342, %v389
  %v439 = vadd.f32 %v343, %v394
  %v440 = vadd.f32 %v344, %v399
  %v441 = vadd.f32 %v345, %v404
  %v442 = vadd.f32 %v346, %v409
  %v443 = vadd.f32 %v347, %v414
  %v444 = vadd.f32 %v348, %v419
  %v445 = vadd.f32 %v349, %v424
  %v446 = vadd.f32 %v350, %v429
  %v447 = vmax.f32 %v431, 0.0
  %v448 = vmax.f32 %v432, 0.0
  %v449 = vmax.f32 %v433, 0.0
  %v450 = vmax.f32 %v434, 0.0
  %v451 = vmax.f32 %v435, 0.0
  %v452 = vmax.f32 %v436, 0.0
  %v453 = vmax.f32 %v437, 0.0
  %v454 = vmax.f32 %v438, 0.0
  %v455 = vmax.f32 %v439, 0.0
  %v456 = vmax.f32 %v440, 0.0
  %v457 = vmax.f32 %v441, 0.0
  %v458 = vmax.f32 %v442, 0.0
  %v459 = vmax.f32 %v443, 0.0
  %v460 = vmax.f32 %v444, 0.0
  %v461 = vmax.f32 %v445, 0.0
  %v462 = vmax.f32 %v446, 0.0
  %v463 = vmul.f32 %v447, %v40
  %v464 = vmul.f32 %v448, %v40
  %v465 = vmul.f32 %v449, %v40
  %v466 = vmul.f32 %v450, %v40
  %v467 = vmul.f32 %v451, %v40
  %v468 = vmul.f32 %v452, %v40
  %v469 = vmul.f32 %v453, %v40
  %v470 = vmul.f32 %v454, %v40
  %v471 = vmul.f32 %v455, %v40
  %v472 = vmul.f32 %v456, %v40
  %v473 = vmul.f32 %v457, %v40
  %v474 = vmul.f32 %v458, %v40
  %v475 = vmul.f32 %v459, %v40
  %v476 = vmul.f32 %v460, %v40
  %v477 = vmul.f32 %v461, %v40
  %v478 = vmul.f32 %v462, %v40
  %v479 = vld [vmem:[%s2] sm:$0xff]
  %v480 = vld [vmem:[%s2 + $0x8] sm:$0xff]
  %v481 = vld [vmem:[%s2 + $0x10] sm:$0xff]
  %v482 = vld [vmem:[%s2 + $0x18] sm:$0xff]
  %v483 = vld [vmem:[%s2 + $0x20] sm:$0xff]
  %v484 = vld [vmem:[%s2 + $0x28] sm:$0xff]
  %v485 = vld [vmem:[%s2 + $0x30] sm:$0xff]
  %v486 = vld [vmem:[%s2 + $0x38] sm:$0xff]
  %v487 = vld [vmem:[%s2 + $0x40] sm:$0xff]
  %v488 = vld [vmem:[%s2 + $0x48] sm:$0xff]
  %v489 = vld [vmem:[%s2 + $0x50] sm:$0xff]
  %v490 = vld [vmem:[%s2 + $0x58] sm:$0xff]
  %v491 = vld [vmem:[%s2 + $0x60] sm:$0xff]
  %v492 = vld [vmem:[%s2 + $0x68] sm:$0xff]
  %v493 = vld [vmem:[%s2 + $0x70] sm:$0xff]
  %v494 = vld [vmem:[%s2 + $0x78] sm:$0xff]
  %v495 = vld [vmem:[%s2 + $0x80] sm:$0xff]
  %v496 = vld [vmem:[%s2 + $0x88] sm:$0xff]
  %v497 = vld [vmem:[%s2 + $0x90] sm:$0xff]
  %v498 = vld [vmem:[%s2 + $0x98] sm:$0xff]
  %v499 = vld [vmem:[%s2 + $0xa0] sm:$0xff]
  %v500 = vld [vmem:[%s2 + $0xa8] sm:$0xff]
  %v501 = vld [vmem:[%s2 + $0xb0] sm:$0xff]
  %v502 = vld [vmem:[%s2 + $0xb8] sm:$0xff]
  %v503 = vld [vmem:[%s2 + $0xc0] sm:$0xff]
  %v504 = vld [vmem:[%s2 + $0xc8] sm:$0xff]
  %v505 = vld [vmem:[%s2 + $0xd0] sm:$0xff]
  %v506 = vld [vmem:[%s2 + $0xd8] sm:$0xff]
  %v507 = vld [vmem:[%s2 + $0xe0] sm:$0xff]
  %v508 = vld [vmem:[%s2 + $0xe8] sm:$0xff]
  %v509 = vld [vmem:[%s2 + $0xf0] sm:$0xff]
  %v510 = vld [vmem:[%s2 + $0xf8] sm:$0xff]
  %v511 = vld [vmem:[%s2 + $0x100] sm:$0xff]
  %v512 = vld [vmem:[%s2 + $0x108] sm:$0xff]
  %v513 = vld [vmem:[%s2 + $0x110] sm:$0xff]
  %v514 = vld [vmem:[%s2 + $0x118] sm:$0xff]
  %515 = vmatprep.subr.mxu0 0.0
  %516 = vmatpush1.msra.mxu0 %v463
  %517 = vmatprep.subr.mxu0 0.0
  %518 = vmatpush1.msra.mxu0 %v464
  %519 = vmatprep.subr.mxu0 0.0
  %520 = vmatpush1.msra.mxu0 %v465
  %521 = vmatprep.subr.mxu0 0.0
  %522 = vmatpush1.msra.mxu0 %v466
  %523 = vmatprep.subr.mxu0 0.0
  %524 = vmatpush1.msra.mxu0 %v467
  %525 = vmatprep.subr.mxu0 0.0
  %526 = vmatpush1.msra.mxu0 %v468
  %527 = vmatprep.subr.mxu0 0.0
  %528 = vmatpush1.msra.mxu0 %v469
  %529 = vmatprep.subr.mxu0 0.0
  %530 = vmatpush1.msra.mxu0 %v470
  %531 = vmatprep.subr.mxu0 0.0
  %532 = vmatpush1.msra.mxu0 %v471
  %533 = vmatprep.subr.mxu0 0.0
  %534 = vmatpush1.msra.mxu0 %v472
  %535 = vmatprep.subr.mxu0 0.0
  %536 = vmatpush1.msra.mxu0 %v473
  %537 = vmatprep.subr.mxu0 0.0
  %538 = vmatpush1.msra.mxu0 %v474
  %539 = vmatprep.subr.mxu0 0.0
  %540 = vmatpush1.msra.mxu0 %v475
  %541 = vmatprep.subr.mxu0 0.0
  %542 = vmatpush1.msra.mxu0 %v476
  %543 = vmatprep.subr.mxu0 0.0
  %544 = vmatpush1.msra.mxu0 %v477
  %545 = vmatprep.subr.mxu0 0.0
  %546 = vmatpush1.msra.mxu0 %v478
  %547 = vmatprep.subr.mxu0 0.0
  %548 = vmatpush1.msra.mxu0 0.0
  %549 = vmatprep.subr.mxu0 0.0
  %550 = vmatpush1.msra.mxu0 0.0
  %551 = vmatprep.subr.mxu0 0.0
  %552 = vmatpush1.msra.mxu0 0.0
  %553 = vmatprep.subr.mxu0 0.0
  %554 = vmatpush1.msra.mxu0 0.0
  %555 = vmatprep.subr.mxu0 0.0
  %556 = vmatpush1.msra.mxu0 0.0
  %557 = vmatprep.subr.mxu0 0.0
  %558 = vmatpush1.msra.mxu0 0.0
  %559 = vmatprep.subr.mxu0 0.0
  %560 = vmatpush1.msra.mxu0 0.0
  %561 = vmatprep.subr.mxu0 0.0
  %562 = vmatpush1.msra.mxu0 0.0
  %563 = vmatprep.subr.mxu0 0.0
  %564 = vmatpush1.msra.mxu0 0.0
  %565 = vmatprep.subr.mxu0 0.0
  %566 = vmatpush1.msra.mxu0 0.0
  %567 = vmatprep.subr.mxu0 0.0
  %568 = vmatpush1.msra.mxu0 0.0
  %569 = vmatprep.subr.mxu0 0.0
  %570 = vmatpush1.msra.mxu0 0.0
  %571 = vmatprep.subr.mxu0 0.0
  %572 = vmatpush1.msra.mxu0 0.0
  %573 = vmatprep.subr.mxu0 0.0
  %574 = vmatpush1.msra.mxu0 0.0
  %575 = vmatprep.subr.mxu0 0.0
  %576 = vmatpush1.msra.mxu0 0.0
  %577 = vmatprep.subr.mxu0 0.0
  %578 = vmatpush1.msra.mxu0 0.0
  %579 = vmatprep.mubr.f32.mxu0 0.0
  %580 = vmatmul.mubr.f32.gmra.mrb[0].mxu0 %v479
  %v581 = vpop.f32.mrb[0].mxu0
  %v582 = vadd.f32 0.0, %v581
  %v583 = vpop.f32.mrb[0].mxu0
  %584 = vmatprep.mubr.f32.mxu0 0.0
  %585 = vmatmul.mubr.f32.gmra.mrb[0].mxu0 %v480
  %v586 = vpop.f32.mrb[0].mxu0
  %v587 = vadd.f32 0.0, %v586
  %v588 = vpop.f32.mrb[0].mxu0
  %589 = vmatprep.mubr.f32.mxu0 0.0
  %590 = vmatmul.mubr.f32.gmra.mrb[0].mxu0 %v481
  %v591 = vpop.f32.mrb[0].mxu0
  %v592 = vadd.f32 0.0, %v591
  %v593 = vpop.f32.mrb[0].mxu0
  %594 = vmatprep.mubr.f32.mxu0 0.0
  %595 = vmatmul.mubr.f32.gmra.mrb[0].mxu0 %v482
  %v596 = vpop.f32.mrb[0].mxu0
  %v597 = vadd.f32 0.0, %v596
  %v598 = vpop.f32.mrb[0].mxu0
  %599 = vmatprep.mubr.f32.mxu0 0.0
  %600 = vmatmul.mubr.f32.gmra.mrb[0].mxu0 %v483
  %v601 = vpop.f32.mrb[0].mxu0
  %v602 = vadd.f32 0.0, %v601
  %v603 = vpop.f32.mrb[0].mxu0
  %604 = vmatprep.mubr.f32.mxu0 0.0
  %605 = vmatmul.mubr.f32.gmra.mrb[0].mxu0 %v484
  %v606 = vpop.f32.mrb[0].mxu0
  %v607 = vadd.f32 0.0, %v606
  %v608 = vpop.f32.mrb[0].mxu0
  %609 = vmatprep.mubr.f32.mxu0 0.0
  %610 = vmatmul.mubr.f32.gmra.mrb[0].mxu0 %v485
  %v611 = vpop.f32.mrb[0].mxu0
  %v612 = vadd.f32 0.0, %v611
  %v613 = vpop.f32.mrb[0].mxu0
  %614 = vmatprep.mubr.f32.mxu0 0.0
  %615 = vmatmul.mubr.f32.gmra.mrb[0].mxu0 %v486
  %v616 = vpop.f32.mrb[0].mxu0
  %v617 = vadd.f32 0.0, %v616
  %v618 = vpop.f32.mrb[0].mxu0
  %619 = vmatprep.mubr.f32.mxu0 0.0
  %620 = vmatmul.mubr.f32.gmra.mrb[0].mxu0 %v487
  %v621 = vpop.f32.mrb[0].mxu0
  %v622 = vadd.f32 0.0, %v621
  %v623 = vpop.f32.mrb[0].mxu0
  %624 = vmatprep.mubr.f32.mxu0 0.0
  %625 = vmatmul.mubr.f32.gmra.mrb[0].mxu0 %v488
  %v626 = vpop.f32.mrb[0].mxu0
  %v627 = vadd.f32 0.0, %v626
  %v628 = vpop.f32.mrb[0].mxu0
  %629 = vmatprep.mubr.f32.mxu0 0.0
  %630 = vmatmul.mubr.f32.gmra.mrb[0].mxu0 %v489
  %v631 = vpop.f32.mrb[0].mxu0
  %v632 = vadd.f32 0.0, %v631
  %v633 = vpop.f32.mrb[0].mxu0
  %634 = vmatprep.mubr.f32.mxu0 0.0
  %635 = vmatmul.mubr.f32.gmra.mrb[0].mxu0 %v490
  %v636 = vpop.f32.mrb[0].mxu0
  %v637 = vadd.f32 0.0, %v636
  %v638 = vpop.f32.mrb[0].mxu0
  %639 = vmatprep.mubr.f32.mxu0 0.0
  %640 = vmatmul.mubr.f32.gmra.mrb[0].mxu0 %v491
  %v641 = vpop.f32.mrb[0].mxu0
  %v642 = vadd.f32 0.0, %v641
  %v643 = vpop.f32.mrb[0].mxu0
  %644 = vmatprep.mubr.f32.mxu0 0.0
  %645 = vmatmul.mubr.f32.gmra.mrb[0].mxu0 %v492
  %v646 = vpop.f32.mrb[0].mxu0
  %v647 = vadd.f32 0.0, %v646
  %v648 = vpop.f32.mrb[0].mxu0
  %649 = vmatprep.mubr.f32.mxu0 0.0
  %650 = vmatmul.mubr.f32.gmra.mrb[0].mxu0 %v493
  %v651 = vpop.f32.mrb[0].mxu0
  %v652 = vadd.f32 0.0, %v651
  %v653 = vpop.f32.mrb[0].mxu0
  %654 = vmatprep.mubr.f32.mxu0 0.0
  %655 = vmatmul.mubr.f32.gmra.mrb[0].mxu0 %v494
  %v656 = vpop.f32.mrb[0].mxu0
  %v657 = vadd.f32 0.0, %v656
  %v658 = vpop.f32.mrb[0].mxu0
  %659 = vmatprep.mubr.f32.mxu0 0.0
  %660 = vmatmul.mubr.f32.gmra.mrb[0].mxu0 %v495
  %v661 = vpop.f32.mrb[0].mxu0
  %v662 = vadd.f32 0.0, %v661
  %v663 = vpop.f32.mrb[0].mxu0
  %664 = vmatprep.mubr.f32.mxu0 0.0
  %665 = vmatmul.mubr.f32.gmra.mrb[0].mxu0 %v496
  %v666 = vpop.f32.mrb[0].mxu0
  %v667 = vadd.f32 0.0, %v666
  %v668 = vpop.f32.mrb[0].mxu0
  %669 = vmatprep.mubr.f32.mxu0 0.0
  %670 = vmatmul.mubr.f32.gmra.mrb[0].mxu0 %v497
  %v671 = vpop.f32.mrb[0].mxu0
  %v672 = vadd.f32 0.0, %v671
  %v673 = vpop.f32.mrb[0].mxu0
  %674 = vmatprep.mubr.f32.mxu0 0.0
  %675 = vmatmul.mubr.f32.gmra.mrb[0].mxu0 %v498
  %v676 = vpop.f32.mrb[0].mxu0
  %v677 = vadd.f32 0.0, %v676
  %v678 = vpop.f32.mrb[0].mxu0
  %679 = vmatprep.mubr.f32.mxu0 0.0
  %680 = vmatmul.mubr.f32.gmra.mrb[0].mxu0 %v499
  %v681 = vpop.f32.mrb[0].mxu0
  %v682 = vadd.f32 0.0, %v681
  %v683 = vpop.f32.mrb[0].mxu0
  %684 = vmatprep.mubr.f32.mxu0 0.0
  %685 = vmatmul.mubr.f32.gmra.mrb[0].mxu0 %v500
  %v686 = vpop.f32.mrb[0].mxu0
  %v687 = vadd.f32 0.0, %v686
  %v688 = vpop.f32.mrb[0].mxu0
  %689 = vmatprep.mubr.f32.mxu0 0.0
  %690 = vmatmul.mubr.f32.gmra.mrb[0].mxu0 %v501
  %v691 = vpop.f32.mrb[0].mxu0
  %v692 = vadd.f32 0.0, %v691
  %v693 = vpop.f32.mrb[0].mxu0
  %694 = vmatprep.mubr.f32.mxu0 0.0
  %695 = vmatmul.mubr.f32.gmra.mrb[0].mxu0 %v502
  %v696 = vpop.f32.mrb[0].mxu0
  %v697 = vadd.f32 0.0, %v696
  %v698 = vpop.f32.mrb[0].mxu0
  %699 = vmatprep.mubr.f32.mxu0 0.0
  %700 = vmatmul.mubr.f32.gmra.mrb[0].mxu0 %v503
  %v701 = vpop.f32.mrb[0].mxu0
  %v702 = vadd.f32 0.0, %v701
  %v703 = vpop.f32.mrb[0].mxu0
  %704 = vmatprep.mubr.f32.mxu0 0.0
  %705 = vmatmul.mubr.f32.gmra.mrb[0].mxu0 %v504
  %v706 = vpop.f32.mrb[0].mxu0
  %v707 = vadd.f32 0.0, %v706
  %v708 = vpop.f32.mrb[0].mxu0
  %709 = vmatprep.mubr.f32.mxu0 0.0
  %710 = vmatmul.mubr.f32.gmra.mrb[0].mxu0 %v505
  %v711 = vpop.f32.mrb[0].mxu0
  %v712 = vadd.f32 0.0, %v711
  %v713 = vpop.f32.mrb[0].mxu0
  %714 = vmatprep.mubr.f32.mxu0 0.0
  %715 = vmatmul.mubr.f32.gmra.mrb[0].mxu0 %v506
  %v716 = vpop.f32.mrb[0].mxu0
  %v717 = vadd.f32 0.0, %v716
  %v718 = vpop.f32.mrb[0].mxu0
  %719 = vmatprep.mubr.f32.mxu0 0.0
  %720 = vmatmul.mubr.f32.gmra.mrb[0].mxu0 %v507
  %v721 = vpop.f32.mrb[0].mxu0
  %v722 = vadd.f32 0.0, %v721
  %v723 = vpop.f32.mrb[0].mxu0
  %724 = vmatprep.mubr.f32.mxu0 0.0
  %725 = vmatmul.mubr.f32.gmra.mrb[0].mxu0 %v508
  %v726 = vpop.f32.mrb[0].mxu0
  %v727 = vadd.f32 0.0, %v726
  %v728 = vpop.f32.mrb[0].mxu0
  %729 = vmatprep.mubr.f32.mxu0 0.0
  %730 = vmatmul.mubr.f32.gmra.mrb[0].mxu0 %v509
  %v731 = vpop.f32.mrb[0].mxu0
  %v732 = vadd.f32 0.0, %v731
  %v733 = vpop.f32.mrb[0].mxu0
  %734 = vmatprep.mubr.f32.mxu0 0.0
  %735 = vmatmul.mubr.f32.gmra.mrb[0].mxu0 %v510
  %v736 = vpop.f32.mrb[0].mxu0
  %v737 = vadd.f32 0.0, %v736
  %v738 = vpop.f32.mrb[0].mxu0
  %739 = vmatprep.mubr.f32.mxu0 0.0
  %740 = vmatmul.mubr.f32.gmra.mrb[0].mxu0 %v511
  %v741 = vpop.f32.mrb[0].mxu0
  %v742 = vadd.f32 0.0, %v741
  %v743 = vpop.f32.mrb[0].mxu0
  %744 = vmatprep.mubr.f32.mxu0 0.0
  %745 = vmatmul.mubr.f32.gmra.mrb[0].mxu0 %v512
  %v746 = vpop.f32.mrb[0].mxu0
  %v747 = vadd.f32 0.0, %v746
  %v748 = vpop.f32.mrb[0].mxu0
  %749 = vmatprep.mubr.f32.mxu0 0.0
  %750 = vmatmul.mubr.f32.gmra.mrb[0].mxu0 %v513
  %v751 = vpop.f32.mrb[0].mxu0
  %v752 = vadd.f32 0.0, %v751
  %v753 = vpop.f32.mrb[0].mxu0
  %754 = vmatprep.mubr.f32.mxu0 0.0
  %755 = vmatmul.mubr.f32.gmra.mrb[0].mxu0 %v514
  %v756 = vpop.f32.mrb[0].mxu0
  %v757 = vadd.f32 0.0, %v756
  %v758 = vpop.f32.mrb[0].mxu0
  %759 = vdwg.mxu0
  %760 = vst [vmem:[#allocation2] sm:$0xff] %v582
  %761 = vst [vmem:[#allocation2 + $0x8] sm:$0xff] %v587
  %762 = vst [vmem:[#allocation2 + $0x10] sm:$0xff] %v592
  %763 = vst [vmem:[#allocation2 + $0x18] sm:$0xff] %v597
  %764 = vst [vmem:[#allocation2 + $0x20] sm:$0xff] %v602
  %765 = vst [vmem:[#allocation2 + $0x28] sm:$0xff] %v607
  %766 = vst [vmem:[#allocation2 + $0x30] sm:$0xff] %v612
  %767 = vst [vmem:[#allocation2 + $0x38] sm:$0xff] %v617
  %768 = vst [vmem:[#allocation2 + $0x40] sm:$0xff] %v622
  %769 = vst [vmem:[#allocation2 + $0x48] sm:$0xff] %v627
  %770 = vst [vmem:[#allocation2 + $0x50] sm:$0xff] %v632
  %771 = vst [vmem:[#allocation2 + $0x58] sm:$0xff] %v637
  %772 = vst [vmem:[#allocation2 + $0x60] sm:$0xff] %v642
  %773 = vst [vmem:[#allocation2 + $0x68] sm:$0xff] %v647
  %774 = vst [vmem:[#allocation2 + $0x70] sm:$0xff] %v652
  %775 = vst [vmem:[#allocation2 + $0x78] sm:$0xff] %v657
  %776 = vst [vmem:[#allocation2 + $0x80] sm:$0xff] %v662
  %777 = vst [vmem:[#allocation2 + $0x88] sm:$0xff] %v667
  %778 = vst [vmem:[#allocation2 + $0x90] sm:$0xff] %v672
  %779 = vst [vmem:[#allocation2 + $0x98] sm:$0xff] %v677
  %780 = vst [vmem:[#allocation2 + $0xa0] sm:$0xff] %v682
  %781 = vst [vmem:[#allocation2 + $0xa8] sm:$0xff] %v687
  %782 = vst [vmem:[#allocation2 + $0xb0] sm:$0xff] %v692
  %783 = vst [vmem:[#allocation2 + $0xb8] sm:$0xff] %v697
  %784 = vst [vmem:[#allocation2 + $0xc0] sm:$0xff] %v702
  %785 = vst [vmem:[#allocation2 + $0xc8] sm:$0xff] %v707
  %786 = vst [vmem:[#allocation2 + $0xd0] sm:$0xff] %v712
  %787 = vst [vmem:[#allocation2 + $0xd8] sm:$0xff] %v717
  %788 = vst [vmem:[#allocation2 + $0xe0] sm:$0xff] %v722
  %789 = vst [vmem:[#allocation2 + $0xe8] sm:$0xff] %v727
  %790 = vst [vmem:[#allocation2 + $0xf0] sm:$0xff] %v732
  %791 = vst [vmem:[#allocation2 + $0xf8] sm:$0xff] %v737
  %792 = vst [vmem:[#allocation2 + $0x100] sm:$0xff] %v742
  %793 = vst [vmem:[#allocation2 + $0x108] sm:$0xff] %v747
  %794 = vst [vmem:[#allocation2 + $0x110] sm:$0xff] %v752
  %795 = vst [vmem:[#allocation2 + $0x118] sm:$0xff] %v757
  %v796 = vld [vmem:[#allocation2] sm:$0xff]
  %v797 = vld [vmem:[#allocation2 + $0x8] sm:$0xff]
  %v798 = vld [vmem:[#allocation2 + $0x10] sm:$0xff]
  %v799 = vld [vmem:[#allocation2 + $0x18] sm:$0xff]
  %800 = vrot.lane.b32.xlu0 %v796, 8
  %v801 = vpop.permute.xlu0 %800
  %802 = vrot.lane.b32.xlu0 %v797, 8
  %v803 = vpop.permute.xlu0 %802
  %804 = vrot.lane.b32.xlu0 %v798, 8
  %v805 = vpop.permute.xlu0 %804
  %806 = vrot.lane.b32.xlu0 %v799, 8
  %v807 = vpop.permute.xlu0 %806
  %v808 = vmul.f32 %v801, %v43
  %v809 = vmul.f32 %v803, %v43
  %v810 = vmul.f32 %v805, %v43
  %v811 = vmul.f32 %v807, %v43
  %v812 = vld [vmem:[#allocation2 + $0x20] sm:$0xff]
  %v813 = vld [vmem:[#allocation2 + $0x28] sm:$0xff]
  %v814 = vld [vmem:[#allocation2 + $0x30] sm:$0xff]
  %v815 = vld [vmem:[#allocation2 + $0x38] sm:$0xff]
  %816 = vrot.lane.b32.xlu0 %v812, 7
  %v817 = vpop.permute.xlu0 %816
  %818 = vrot.lane.b32.xlu0 %v813, 7
  %v819 = vpop.permute.xlu0 %818
  %820 = vrot.lane.b32.xlu0 %v814, 7
  %v821 = vpop.permute.xlu0 %820
  %822 = vrot.lane.b32.xlu0 %v815, 7
  %v823 = vpop.permute.xlu0 %822
  %v824 = vadd.f32 %v808, %v817
  %v825 = vadd.f32 %v809, %v819
  %v826 = vadd.f32 %v810, %v821
  %v827 = vadd.f32 %v811, %v823
  %v828 = vld [vmem:[#allocation2 + $0x40] sm:$0xff]
  %v829 = vld [vmem:[#allocation2 + $0x48] sm:$0xff]
  %v830 = vld [vmem:[#allocation2 + $0x50] sm:$0xff]
  %v831 = vld [vmem:[#allocation2 + $0x58] sm:$0xff]
  %832 = vrot.lane.b32.xlu0 %v828, 6
  %v833 = vpop.permute.xlu0 %832
  %834 = vrot.lane.b32.xlu0 %v829, 6
  %v835 = vpop.permute.xlu0 %834
  %836 = vrot.lane.b32.xlu0 %v830, 6
  %v837 = vpop.permute.xlu0 %836
  %838 = vrot.lane.b32.xlu0 %v831, 6
  %v839 = vpop.permute.xlu0 %838
  %v840 = vmul.f32 %v833, %v46
  %v841 = vmul.f32 %v835, %v46
  %v842 = vmul.f32 %v837, %v46
  %v843 = vmul.f32 %v839, %v46
  %v844 = vadd.f32 %v824, %v840
  %v845 = vadd.f32 %v825, %v841
  %v846 = vadd.f32 %v826, %v842
  %v847 = vadd.f32 %v827, %v843
  %v848 = vld [vmem:[#allocation2 + $0x60] sm:$0xff]
  %v849 = vld [vmem:[#allocation2 + $0x68] sm:$0xff]
  %v850 = vld [vmem:[#allocation2 + $0x70] sm:$0xff]
  %v851 = vld [vmem:[#allocation2 + $0x78] sm:$0xff]
  %852 = vrot.lane.b32.xlu0 %v848, 1
  %v853 = vpop.permute.xlu0 %852
  %854 = vrot.lane.b32.xlu0 %v849, 1
  %v855 = vpop.permute.xlu0 %854
  %856 = vrot.lane.b32.xlu0 %v850, 1
  %v857 = vpop.permute.xlu0 %856
  %858 = vrot.lane.b32.xlu0 %v851, 1
  %v859 = vpop.permute.xlu0 %858
  %v860 = vmul.f32 %v853, %v43
  %v861 = vmul.f32 %v855, %v43
  %v862 = vmul.f32 %v857, %v43
  %v863 = vmul.f32 %v859, %v43
  %v864 = vadd.f32 %v844, %v860
  %v865 = vadd.f32 %v845, %v861
  %v866 = vadd.f32 %v846, %v862
  %v867 = vadd.f32 %v847, %v863
  %v868 = vld [vmem:[#allocation2 + $0x80] sm:$0xff]
  %v869 = vld [vmem:[#allocation2 + $0x88] sm:$0xff]
  %v870 = vld [vmem:[#allocation2 + $0x90] sm:$0xff]
  %v871 = vld [vmem:[#allocation2 + $0x98] sm:$0xff]
  %v872 = vadd.f32 %v864, %v868
  %v873 = vadd.f32 %v865, %v869
  %v874 = vadd.f32 %v866, %v870
  %v875 = vadd.f32 %v867, %v871
  %v876 = vld [vmem:[#allocation2 + $0xa0] sm:$0xff]
  %v877 = vld [vmem:[#allocation2 + $0xa8] sm:$0xff]
  %v878 = vld [vmem:[#allocation2 + $0xb0] sm:$0xff]
  %v879 = vld [vmem:[#allocation2 + $0xb8] sm:$0xff]
  %880 = vrot.lane.b32.xlu0 %v876, 127
  %v881 = vpop.permute.xlu0 %880
  %882 = vrot.lane.b32.xlu0 %v877, 127
  %v883 = vpop.permute.xlu0 %882
  %884 = vrot.lane.b32.xlu0 %v878, 127
  %v885 = vpop.permute.xlu0 %884
  %886 = vrot.lane.b32.xlu0 %v879, 127
  %v887 = vpop.permute.xlu0 %886
  %v888 = vmul.f32 %v881, %v46
  %v889 = vmul.f32 %v883, %v46
  %v890 = vmul.f32 %v885, %v46
  %v891 = vmul.f32 %v887, %v46
  %v892 = vadd.f32 %v872, %v888
  %v893 = vadd.f32 %v873, %v889
  %v894 = vadd.f32 %v874, %v890
  %v895 = vadd.f32 %v875, %v891
  %v896 = vld [vmem:[#allocation2 + $0xc0] sm:$0xff]
  %v897 = vld [vmem:[#allocation2 + $0xc8] sm:$0xff]
  %v898 = vld [vmem:[#allocation2 + $0xd0] sm:$0xff]
  %v899 = vld [vmem:[#allocation2 + $0xd8] sm:$0xff]
  %900 = vrot.lane.b32.xlu0 %v896, 122
  %v901 = vpop.permute.xlu0 %900
  %902 = vrot.lane.b32.xlu0 %v897, 122
  %v903 = vpop.permute.xlu0 %902
  %904 = vrot.lane.b32.xlu0 %v898, 122
  %v905 = vpop.permute.xlu0 %904
  %906 = vrot.lane.b32.xlu0 %v899, 122
  %v907 = vpop.permute.xlu0 %906
  %v908 = vmul.f32 %v901, %v43
  %v909 = vmul.f32 %v903, %v43
  %v910 = vmul.f32 %v905, %v43
  %v911 = vmul.f32 %v907, %v43
  %v912 = vadd.f32 %v892, %v908
  %v913 = vadd.f32 %v893, %v909
  %v914 = vadd.f32 %v894, %v910
  %v915 = vadd.f32 %v895, %v911
  %v916 = vld [vmem:[#allocation2 + $0xe0] sm:$0xff]
  %v917 = vld [vmem:[#allocation2 + $0xe8] sm:$0xff]
  %v918 = vld [vmem:[#allocation2 + $0xf0] sm:$0xff]
  %v919 = vld [vmem:[#allocation2 + $0xf8] sm:$0xff]
  %920 = vrot.lane.b32.xlu0 %v916, 121
  %v921 = vpop.permute.xlu0 %920
  %922 = vrot.lane.b32.xlu0 %v917, 121
  %v923 = vpop.permute.xlu0 %922
  %924 = vrot.lane.b32.xlu0 %v918, 121
  %v925 = vpop.permute.xlu0 %924
  %926 = vrot.lane.b32.xlu0 %v919, 121
  %v927 = vpop.permute.xlu0 %926
  %v928 = vadd.f32 %v912, %v921
  %v929 = vadd.f32 %v913, %v923
  %v930 = vadd.f32 %v914, %v925
  %v931 = vadd.f32 %v915, %v927
  %v932 = vld [vmem:[#allocation2 + $0x100] sm:$0xff]
  %v933 = vld [vmem:[#allocation2 + $0x108] sm:$0xff]
  %v934 = vld [vmem:[#allocation2 + $0x110] sm:$0xff]
  %v935 = vld [vmem:[#allocation2 + $0x118] sm:$0xff]
  %936 = vrot.lane.b32.xlu0 %v932, 120
  %v937 = vpop.permute.xlu0 %936
  %938 = vrot.lane.b32.xlu0 %v933, 120
  %v939 = vpop.permute.xlu0 %938
  %940 = vrot.lane.b32.xlu0 %v934, 120
  %v941 = vpop.permute.xlu0 %940
  %942 = vrot.lane.b32.xlu0 %v935, 120
  %v943 = vpop.permute.xlu0 %942
  %v944 = vmul.f32 %v937, %v46
  %v945 = vmul.f32 %v939, %v46
  %v946 = vmul.f32 %v941, %v46
  %v947 = vmul.f32 %v943, %v46
  %v948 = vadd.f32 %v928, %v944
  %v949 = vadd.f32 %v929, %v945
  %v950 = vadd.f32 %v930, %v946
  %v951 = vadd.f32 %v931, %v947
  %952 = vst [vmem:[%s3] sm:$0xff] %v948
  %953 = vst [vmem:[%s3 + $0x8] sm:$0xff] %v949
  %954 = vst [vmem:[%s3 + $0x10] sm:$0xff] %v950
  %955 = vst [vmem:[%s3 + $0x18] sm:$0xff] %v951
  // Predicated region
  $region14: #{bn_relu_conv.1} parent=0 // pred_check
    _
  $region15: #{bn_relu_conv.1} parent=0 // pred_check_branch
    %957 = sbr.rel (0) target = $region17
  $region16: #{bn_relu_conv.1} parent=0 // pred_region
    _
  $region17: #{bn_relu_conv.1} parent=0 // pred_fallthru
    _
  // Predicated region
  $region18: #{bn_relu_conv.1} parent=0 // pred_check
    _
  $region19: #{bn_relu_conv.1} parent=0 // pred_check_branch
    %959 = sbr.rel (0) target = $region21
  $region20: #{bn_relu_conv.1} parent=0 // pred_region
    _
  $region21: #{bn_relu_conv.1} parent=0 // pred_fallthru
    _

</llo_original>
